<compile_context>
chip_gen: v7x
topology: tpu7x:2x2x1
jax: 0.10.0
libtpu: 0.0.40
codegen_flags: <defaults>
</compile_context>

<pallas_src>
import functools

import jax
import jax.numpy as jnp
from jax.experimental import pallas as pl
from jax.experimental.pallas import tpu as pltpu

_NEG_BIG = -1e30  # "minus infinity" that stays NaN-free in f32 arithmetic


def _round_up(x, m):
    return (x + m - 1) // m * m


def _criterion_lse_kernel(x_ref, w_ref, b_ref, lse_ref, m_ref, l_ref, *, tv, vocab):
    """Grid = (token_tiles, vocab_tiles); vocab ('arbitrary') is innermost.

    x_ref  : (tm, H) bf16   token activations (VMEM-resident across vocab steps)
    w_ref  : (H, tv) bf16   streamed generator-weight slice
    b_ref  : (1, tv) f32    streamed bias slice
    lse_ref: (tm, 1) f32    per-token log-sum-exp, written on the last vocab step
    m_ref / l_ref : (tm,1) f32 running max / running sum-exp scratch
    """
    # NOTE: program_id/num_programs are bound OUTSIDE any pl.when body; calling
    # them inside a pl.when branch broke lowering in the previous version.
    j = pl.program_id(1)
    last_j = pl.num_programs(1) - 1

    @pl.when(j == 0)
    def _():
        m_ref[...] = jnp.full_like(m_ref, _NEG_BIG)
        l_ref[...] = jnp.zeros_like(l_ref)

    # generator slice: logits = x @ W[:, j*tv:(j+1)*tv] + b   (bf16 MXU, f32 acc)
    logits = jnp.dot(x_ref[...], w_ref[...],
                     preferred_element_type=jnp.float32) + b_ref[...]

    if vocab % tv != 0:
        # Ragged last vocab tile: weight/bias are not padded in HBM, so mask
        # out-of-range columns.  Compare the lane iota against the scalar
        # (vocab - j*tv) to avoid a per-element index add.
        col = jax.lax.broadcasted_iota(jnp.int32, logits.shape, 1)
        logits = jnp.where(col < vocab - j * tv, logits, _NEG_BIG)

    # online log-sum-exp update over the vocab axis
    m_prev = m_ref[...]
    m_new = jnp.maximum(m_prev, jnp.max(logits, axis=-1, keepdims=True))
    l_ref[...] = (l_ref[...] * jnp.exp(m_prev - m_new)
                  + jnp.sum(jnp.exp(logits - m_new), axis=-1, keepdims=True))
    m_ref[...] = m_new

    @pl.when(j == last_j)
    def _():
        lse_ref[...] = m_ref[...] + jnp.log(l_ref[...])


def criterion_forward(x, weight, bias, target, *, shard_size=None,
                      normalization=1.0, tm_target=1024, tv_target=1024):
    """Forward of Criterion: total NLL over tokens divided by `normalization`.

    x:      (B, S, H) float  decoder output
    weight: (H, V)           generator weight (ideally already bf16)
    bias:   (V,)             generator bias
    target: (B, S)    int    target token ids
    `shard_size` is accepted for API parity; the token-tile grid is the shard
    loop (identical accumulated sum).
    """
    del shard_size
    B, S, H = x.shape
    V = weight.shape[1]
    N = B * S

    # --- tiling (lane/sublane aligned) --------------------------------------
    tm = min(tm_target, _round_up(N, 8))
    if N > 8:                       # >= 2 token tiles so both TensorCores get work
        tm = min(tm, _round_up((N + 1) // 2, 8))
    n_pad = _round_up(N, tm)
    tv = min(_round_up(tv_target, 128), _round_up(V, 128))
    num_tm = n_pad // tm
    num_tv = -(-V // tv)            # cdiv: ragged last vocab tile masked in-kernel

    # Keep the generator weight in bf16 (no per-call pad/cast pass over W).
    w = weight if weight.dtype == jnp.bfloat16 else weight.astype(jnp.bfloat16)
    b = bias.astype(jnp.float32).reshape(1, V)
    x_flat = x.reshape(N, H).astype(jnp.bfloat16)
    tgt = target.reshape(N).astype(jnp.int32)
    if n_pad != N:
        x_flat = jnp.pad(x_flat, ((0, n_pad - N), (0, 0)))

    kernel = functools.partial(_criterion_lse_kernel, tv=tv, vocab=V)

    # VMEM budget: double-buffered x / w / b / out + scratch + logits temps.
    vmem_bytes = (2 * tm * H * 2 + 2 * H * tv * 2 + 2 * tv * 4
                  + 2 * tm * 4 + 2 * tm * 4 + 2 * tm * tv * 4 + (1 << 22))
    vmem_limit = int(min(vmem_bytes, 100 * 1024 * 1024))

    grid_spec = pltpu.PrefetchScalarGridSpec(
        num_scalar_prefetch=0,
        grid=(num_tm, num_tv),
        in_specs=[
            pl.BlockSpec((tm, H), lambda i, j: (i, 0)),   # token tile (resident over j)
            pl.BlockSpec((H, tv), lambda i, j: (0, j)),   # streamed weight slice
            pl.BlockSpec((1, tv), lambda i, j: (0, j)),   # streamed bias slice
        ],
        out_specs=pl.BlockSpec((tm, 1), lambda i, j: (i, 0)),
        scratch_shapes=[pltpu.VMEM((tm, 1), jnp.float32),   # running max
                        pltpu.VMEM((tm, 1), jnp.float32)],  # running sum-exp
    )

    lse = pl.pallas_call(
        kernel,
        out_shape=jax.ShapeDtypeStruct((n_pad, 1), jnp.float32),
        grid_spec=grid_spec,
        compiler_params=pltpu.CompilerParams(
            dimension_semantics=("parallel", "arbitrary"),
            vmem_limit_bytes=vmem_limit),
        cost_estimate=pl.CostEstimate(
            flops=2 * n_pad * H * num_tv * tv,
            transcendentals=n_pad * num_tv * tv,
            bytes_accessed=num_tm * H * V * 2 + n_pad * H * 2 + num_tv * V * 4 + n_pad * 4),
    )(x_flat, w, b)

    # Target-logit pick hoisted out of the kernel: one small N*H gather pass.
    w_cols = jnp.take(w, tgt, axis=1)                                  # (H, N) bf16
    picked = (jnp.sum(x_flat[:N].astype(jnp.float32) * w_cols.T.astype(jnp.float32),
                      axis=-1)
              + bias.astype(jnp.float32)[tgt])                         # (N,)

    total = jnp.sum(lse[:N, 0]) - jnp.sum(picked)                      # sum of NLL
    return (total / jnp.float32(normalization)).astype(jnp.float32)


def _reference_forward(x, weight, bias, target, normalization):
    """Pure-JAX reference with matching (bf16 inputs, f32 softmax) numerics."""
    B, S, H = x.shape
    xb = x.reshape(B * S, H).astype(jnp.bfloat16).astype(jnp.float32)
    wb = weight.astype(jnp.bfloat16).astype(jnp.float32)
    logits = xb @ wb + bias.astype(jnp.float32)
    logp = jax.nn.log_softmax(logits, axis=-1)
    nll = -jnp.take_along_axis(logp, target.reshape(-1, 1), axis=-1)
    return jnp.sum(nll) / normalization


if __name__ == "__main__":
    key = jax.random.PRNGKey(0)
    k_x, k_w, k_b, k_t = jax.random.split(key, 4)

    # small shapes consistent with a decoder output + generator
    B, S, H, V = 2, 7, 32, 320          # V chosen non-multiple of 128 to test the mask
    shard_size = 2
    normalization = float(B * S)        # "tokens" normalization

    x = jax.random.normal(k_x, (B, S, H), dtype=jnp.float32)
    weight = (jax.random.normal(k_w, (H, V), dtype=jnp.float32) * 0.1
              ).astype(jnp.bfloat16)    # generator weight kept in bf16 at the caller
    bias = jax.random.normal(k_b, (V,), dtype=jnp.float32) * 0.1
    target = jax.random.randint(k_t, (B, S), 0, V, dtype=jnp.int32)

    fwd = jax.jit(functools.partial(
        criterion_forward, shard_size=shard_size, normalization=normalization,
        tv_target=128))                 # small tv so vocab streaming is exercised
    loss = fwd(x, weight, bias, target)
    jax.block_until_ready(loss)

    ref = _reference_forward(x, weight, bias, target, normalization)
    assert jnp.allclose(loss, ref, rtol=2e-3, atol=2e-3), (loss, ref)

    print("KERNEL_OK")
</pallas_src>

<mosaic_0001>
module attributes {stable_mosaic.version = 11 : i64} {
  func.func @_criterion_lse_kernel(%arg0: i32, %arg1: i32, %arg2: memref<8x32xbf16, #tpu.memory_space<vmem>>, %arg3: memref<32x128xbf16, #tpu.memory_space<vmem>>, %arg4: memref<1x128xf32, #tpu.memory_space<vmem>>, %arg5: memref<8x1xf32, #tpu.memory_space<vmem>>, %arg6: memref<8x1xf32, #tpu.memory_space<vmem>>, %arg7: memref<8x1xf32, #tpu.memory_space<vmem>>) attributes {dimension_semantics = [#tpu.dimension_semantics<parallel>, #tpu.dimension_semantics<arbitrary>], iteration_bounds = array<i64: 2, 3>, scalar_prefetch = 0 : i64, scratch_operands = 2 : i64, tpu.core_type = #tpu.core_type<tc>, window_params = [{transform_indices = @transform_0, window_bounds = array<i64: 8, 32>}, {transform_indices = @transform_1, window_bounds = array<i64: 32, 128>}, {transform_indices = @transform_2, window_bounds = array<i64: 1, 128>}, {transform_indices = @transform_3, window_bounds = array<i64: 8, 1>}]} {
    %c0_i32 = arith.constant 0 : i32
    %0 = arith.cmpi eq, %arg1, %c0_i32 : i32
    %1 = arith.extui %0 : i1 to i32
    %c0_i32_0 = arith.constant 0 : i32
    %2 = arith.cmpi ne, %1, %c0_i32_0 : i32
    scf.if %2 {
      %cst_18 = arith.constant -1.000000e+30 : f32
      %35 = vector.broadcast %cst_18 : f32 to vector<8x1xf32>
      %c0_19 = arith.constant 0 : index
      %c0_20 = arith.constant 0 : index
      %36 = vector.load %arg6[%c0_19, %c0_20] : memref<8x1xf32, #tpu.memory_space<vmem>>, vector<8x1xf32>
      tpu.vector_store %arg6[%c0_19, %c0_20], %35 {strides = array<i32>} : memref<8x1xf32, #tpu.memory_space<vmem>>, vector<8x1xf32>,
      %cst_21 = arith.constant 0.000000e+00 : f32
      %37 = vector.broadcast %cst_21 : f32 to vector<8x1xf32>
      %c0_22 = arith.constant 0 : index
      %c0_23 = arith.constant 0 : index
      %38 = vector.load %arg7[%c0_22, %c0_23] : memref<8x1xf32, #tpu.memory_space<vmem>>, vector<8x1xf32>
      tpu.vector_store %arg7[%c0_22, %c0_23], %37 {strides = array<i32>} : memref<8x1xf32, #tpu.memory_space<vmem>>, vector<8x1xf32>,
    } else {
    }
    %c0 = arith.constant 0 : index
    %c0_1 = arith.constant 0 : index
    %3 = vector.load %arg2[%c0, %c0_1] : memref<8x32xbf16, #tpu.memory_space<vmem>>, vector<8x32xbf16>
    %c0_2 = arith.constant 0 : index
    %c0_3 = arith.constant 0 : index
    %4 = vector.load %arg3[%c0_2, %c0_3] : memref<32x128xbf16, #tpu.memory_space<vmem>>, vector<32x128xbf16>
    %cst = arith.constant dense<0.000000e+00> : vector<8x128xf32>
    %5 = tpu.matmul %3, %4, %cst {dimension_numbers = #tpu.dot_dimension_numbers<[1], [0], [0], [1], [0, 0, 1, 1], [], []>} : vector<8x32xbf16>, vector<32x128xbf16>, vector<8x128xf32> -> vector<8x128xf32>
    %c0_4 = arith.constant 0 : index
    %c0_5 = arith.constant 0 : index
    %6 = vector.load %arg4[%c0_4, %c0_5] : memref<1x128xf32, #tpu.memory_space<vmem>>, vector<1x128xf32>
    %7 = vector.broadcast %6 : vector<1x128xf32> to vector<8x128xf32>
    %8 = arith.addf %5, %7 : vector<8x128xf32>
    %9 = tpu.iota {dimensions = array<i32: 1>} : vector<8x128xi32>
    %c128_i32 = arith.constant 128 : i32
    %10 = arith.muli %arg1, %c128_i32 : i32
    %c320_i32 = arith.constant 320 : i32
    %11 = arith.subi %c320_i32, %10 : i32
    %12 = vector.broadcast %11 : i32 to vector<8x128xi32>
    %13 = arith.cmpi slt, %9, %12 : vector<8x128xi32>
    %cst_6 = arith.constant -1.000000e+30 : f32
    %14 = vector.broadcast %cst_6 : f32 to vector<8x128xf32>
    %15 = arith.select %13, %8, %14 : vector<8x128xi1>, vector<8x128xf32>
    %c0_7 = arith.constant 0 : index
    %c0_8 = arith.constant 0 : index
    %16 = vector.load %arg6[%c0_7, %c0_8] : memref<8x1xf32, #tpu.memory_space<vmem>>, vector<8x1xf32>
    %cst_9 = arith.constant dense<0xFF800000> : vector<8xf32>
    %17 = vector.multi_reduction <maximumf>, %15, %cst_9 [1] : vector<8x128xf32> to vector<8xf32>
    %18 = vector.shape_cast %17 : vector<8xf32> to vector<8x1xf32>
    %19 = arith.maximumf %16, %18 : vector<8x1xf32>
    %c0_10 = arith.constant 0 : index
    %c0_11 = arith.constant 0 : index
    %20 = vector.load %arg7[%c0_10, %c0_11] : memref<8x1xf32, #tpu.memory_space<vmem>>, vector<8x1xf32>
    %21 = arith.subf %16, %19 : vector<8x1xf32>
    %22 = math.exp %21 : vector<8x1xf32>
    %23 = arith.mulf %20, %22 : vector<8x1xf32>
    %24 = vector.broadcast %19 : vector<8x1xf32> to vector<8x128xf32>
    %25 = arith.subf %15, %24 : vector<8x128xf32>
    %26 = math.exp %25 : vector<8x128xf32>
    %cst_12 = arith.constant dense<0.000000e+00> : vector<8xf32>
    %27 = vector.multi_reduction <add>, %26, %cst_12 [1] : vector<8x128xf32> to vector<8xf32>
    %28 = vector.shape_cast %27 : vector<8xf32> to vector<8x1xf32>
    %29 = arith.addf %23, %28 : vector<8x1xf32>
    %c0_13 = arith.constant 0 : index
    %c0_14 = arith.constant 0 : index
    %30 = vector.load %arg7[%c0_13, %c0_14] : memref<8x1xf32, #tpu.memory_space<vmem>>, vector<8x1xf32>
    tpu.vector_store %arg7[%c0_13, %c0_14], %29 {strides = array<i32>} : memref<8x1xf32, #tpu.memory_space<vmem>>, vector<8x1xf32>,
    %c0_15 = arith.constant 0 : index
    %c0_16 = arith.constant 0 : index
    %31 = vector.load %arg6[%c0_15, %c0_16] : memref<8x1xf32, #tpu.memory_space<vmem>>, vector<8x1xf32>
    tpu.vector_store %arg6[%c0_15, %c0_16], %19 {strides = array<i32>} : memref<8x1xf32, #tpu.memory_space<vmem>>, vector<8x1xf32>,
    %c2_i32 = arith.constant 2 : i32
    %32 = arith.cmpi eq, %arg1, %c2_i32 : i32
    %33 = arith.extui %32 : i1 to i32
    %c0_i32_17 = arith.constant 0 : i32
    %34 = arith.cmpi ne, %33, %c0_i32_17 : i32
    scf.if %34 {
      %c0_18 = arith.constant 0 : index
      %c0_19 = arith.constant 0 : index
      %35 = vector.load %arg6[%c0_18, %c0_19] : memref<8x1xf32, #tpu.memory_space<vmem>>, vector<8x1xf32>
      %c0_20 = arith.constant 0 : index
      %c0_21 = arith.constant 0 : index
      %36 = vector.load %arg7[%c0_20, %c0_21] : memref<8x1xf32, #tpu.memory_space<vmem>>, vector<8x1xf32>
      %37 = math.log %36 : vector<8x1xf32>
      %38 = arith.addf %35, %37 : vector<8x1xf32>
      %c0_22 = arith.constant 0 : index
      %c0_23 = arith.constant 0 : index
      %39 = vector.load %arg5[%c0_22, %c0_23] : memref<8x1xf32, #tpu.memory_space<vmem>>, vector<8x1xf32>
      tpu.vector_store %arg5[%c0_22, %c0_23], %38 {strides = array<i32>} : memref<8x1xf32, #tpu.memory_space<vmem>>, vector<8x1xf32>,
    } else {
    }
    return
  }
  func.func @transform_0(%arg0: i32, %arg1: i32) -> (i32, i32) {
    %c0_i32 = arith.constant 0 : i32
    %c0_i32_0 = arith.constant 0 : i32
    return %arg0, %c0_i32 : i32, i32
  }
  func.func @transform_1(%arg0: i32, %arg1: i32) -> (i32, i32) {
    %c0_i32 = arith.constant 0 : i32
    %c0_i32_0 = arith.constant 0 : i32
    return %c0_i32, %arg1 : i32, i32
  }
  func.func @transform_2(%arg0: i32, %arg1: i32) -> (i32, i32) {
    %c0_i32 = arith.constant 0 : i32
    %c0_i32_0 = arith.constant 0 : i32
    return %c0_i32, %arg1 : i32, i32
  }
  func.func @transform_3(%arg0: i32, %arg1: i32) -> (i32, i32) {
    %c0_i32 = arith.constant 0 : i32
    %c0_i32_0 = arith.constant 0 : i32
    return %arg0, %c0_i32 : i32, i32
  }
}

</mosaic_0001>

<llo_original>
// kernel: criterion_forward.1
$region0: #{criterion_forward.1}
  #allocation0 [shape = 'u32[]', space=smem, size = 0x4, offset = 0x4, fixed_abs, tag = 'smem constant byte address 0x4 - core index']
  #allocation1 [shape = 'u32[144,128]{1,0:T(1,128)}', space=vmem, size = 0x12000, scoped, tag = 'internal scratch']
  #allocation2 [shape = 'f32[8,1]{1,0:T(8,128)}', space=vmem, size = 0x1000, scoped, tag = 'scratch operand']
  #allocation3 [shape = 'f32[8,1]{1,0:T(8,128)}', space=vmem, size = 0x1000, scoped, tag = 'scratch operand']
  %s0 = inlined_call_operand.vmem [shape: bf16[16,32], index: 0, kind: input, shape index: {}]
  %s1 = inlined_call_operand.vmem [shape: bf16[32,320], index: 1, kind: input, shape index: {}]
  %s2 = inlined_call_operand.vmem [shape: f32[1,320], index: 2, kind: input, shape index: {}]
  %s3 = inlined_call_operand.vmem [shape: f32[16,1], index: 3, kind: output, shape index: {}]
  %s4 = sld [smem:[#allocation0]]
  $region94: #{criterion_forward.1} parent=0
    _
  %s6 = ssub.s32 1, %s4
  %s7 = scalar_select 0, %s6, %s4
  $region1: #{criterion_forward.1} parent=0
    #allocation4 [shape = 'u8[16384]{0}', space=vmem, size = 0x4000, scoped, tag = 'input window, operand 1']
    loop: start=0, step=1, limit=8
    $region2: #{criterion_forward.1} parent=1 // loop_pre_header
      _
    $region3: #{criterion_forward.1} parent=1 // loop_header
      %s9 = sphi 0, %s13
      %p10 = scmp.ge.s32.totalorder %s9, 8
      %s16 = sphi 0, %s28
      %s17 = sphi 0, %s24
      %s18 = sphi 0, %s16
      %s19 = sphi 0, %s17
      %s20 = sphi 0, %s18
      %s21 = sphi 0, %s19
      %s31 = sphi 0, %s33
      %s34 = sphi 0, %s31
      %s35 = sphi 0, %s34
      %s51 = sphi 0, %s35
      %s57 = sphi 0, %s59
      %s60 = sphi 0, %s57
      %s61 = sphi 0, %s60
      %s77 = sphi 0, %s61
      %s83 = sphi 0, %s85
      %s86 = sphi 0, %s83
      %s87 = sphi 0, %s86
      %s103 = sphi 0, %s87
      %s109 = sphi 0, %s111
      %s112 = sphi 0, %s109
      %s113 = sphi 0, %s112
      %s129 = sphi 0, %s113
    $region4: #{criterion_forward.1} parent=1 // loop_header_branch
      %12 = sbr.rel (%p10) target = $region8
    $region5: #{criterion_forward.1} parent=1 // loop_body
      %s14 = ssub.s32 %s9, 1
      %s15 = ssub.s32 %s9, 2
      %s22 = sadd.s32 1, %s17
      %p23 = scmp.ge.s32.totalorder %s22, 3
      %s24 = scalar_select %p23, 0, %s22
      %s25 = sadd.s32 1, %s16
      %s26 = scalar_select %p23, %s25, %s16
      %p27 = scmp.ge.s32.totalorder %s26, 2
      %s28 = scalar_select %p27, 0, %s26
      %s29 = ssub.s32 %s16, %s28
      %p30 = scmp.eq.s32.totalorder %s29, 0
      %s32 = sadd.s32 %s31, 1
      %s33 = scalar_select %p30, %s31, %s32
      %p36 = pneg %p30
      %p37 = scmp.eq.s32.totalorder %s9, 5
      %p38 = por %p36, %p37
      %p39 = scmp.ne.s32.totalorder %s31, %s34
      %p40 = scmp.eq.s32.totalorder %s9, 0
      %p41 = por %p39, %p40
      %p42 = scmp.ne.s32.totalorder %s31, %s34
      %p43 = scmp.eq.s32.totalorder %s14, 5
      %p44 = por %p42, %p43
      %p45 = scmp.ne.s32.totalorder %s34, %s35
      %p46 = scmp.eq.s32.totalorder %s14, 0
      %p47 = por %p45, %p46
      %p48 = scmp.ne.s32.totalorder %s34, %s35
      %p49 = scmp.eq.s32.totalorder %s15, 5
      %p50 = por %p48, %p49
      %p52 = scmp.ne.s32.totalorder %s35, %s51
      %p53 = scmp.eq.s32.totalorder %s15, 0
      %p54 = por %p52, %p53
      %s55 = ssub.s32 %s17, %s24
      %p56 = scmp.eq.s32.totalorder %s55, 0
      %s58 = sadd.s32 %s57, 1
      %s59 = scalar_select %p56, %s57, %s58
      %p62 = pneg %p56
      %p63 = scmp.eq.s32.totalorder %s9, 5
      %p64 = por %p62, %p63
      %p65 = scmp.ne.s32.totalorder %s57, %s60
      %p66 = scmp.eq.s32.totalorder %s9, 0
      %p67 = por %p65, %p66
      %p68 = scmp.ne.s32.totalorder %s57, %s60
      %p69 = scmp.eq.s32.totalorder %s14, 5
      %p70 = por %p68, %p69
      %p71 = scmp.ne.s32.totalorder %s60, %s61
      %p72 = scmp.eq.s32.totalorder %s14, 0
      %p73 = por %p71, %p72
      %p74 = scmp.ne.s32.totalorder %s60, %s61
      %p75 = scmp.eq.s32.totalorder %s15, 5
      %p76 = por %p74, %p75
      %p78 = scmp.ne.s32.totalorder %s61, %s77
      %p79 = scmp.eq.s32.totalorder %s15, 0
      %p80 = por %p78, %p79
      %s81 = ssub.s32 %s17, %s24
      %p82 = scmp.eq.s32.totalorder %s81, 0
      %s84 = sadd.s32 %s83, 1
      %s85 = scalar_select %p82, %s83, %s84
      %p88 = pneg %p82
      %p89 = scmp.eq.s32.totalorder %s9, 5
      %p90 = por %p88, %p89
      %p91 = scmp.ne.s32.totalorder %s83, %s86
      %p92 = scmp.eq.s32.totalorder %s9, 0
      %p93 = por %p91, %p92
      %p94 = scmp.ne.s32.totalorder %s83, %s86
      %p95 = scmp.eq.s32.totalorder %s14, 5
      %p96 = por %p94, %p95
      %p97 = scmp.ne.s32.totalorder %s86, %s87
      %p98 = scmp.eq.s32.totalorder %s14, 0
      %p99 = por %p97, %p98
      %p100 = scmp.ne.s32.totalorder %s86, %s87
      %p101 = scmp.eq.s32.totalorder %s15, 5
      %p102 = por %p100, %p101
      %p104 = scmp.ne.s32.totalorder %s87, %s103
      %p105 = scmp.eq.s32.totalorder %s15, 0
      %p106 = por %p104, %p105
      %s107 = ssub.s32 %s16, %s28
      %p108 = scmp.eq.s32.totalorder %s107, 0
      %s110 = sadd.s32 %s109, 1
      %s111 = scalar_select %p108, %s109, %s110
      %p114 = pneg %p108
      %p115 = scmp.eq.s32.totalorder %s9, 5
      %p116 = por %p114, %p115
      %p117 = scmp.ne.s32.totalorder %s109, %s112
      %p118 = scmp.eq.s32.totalorder %s9, 0
      %p119 = por %p117, %p118
      %p120 = scmp.ne.s32.totalorder %s109, %s112
      %p121 = scmp.eq.s32.totalorder %s14, 5
      %p122 = por %p120, %p121
      %p123 = scmp.ne.s32.totalorder %s112, %s113
      %p124 = scmp.eq.s32.totalorder %s14, 0
      %p125 = por %p123, %p124
      %p126 = scmp.ne.s32.totalorder %s112, %s113
      %p127 = scmp.eq.s32.totalorder %s15, 5
      %p128 = por %p126, %p127
      %p130 = scmp.ne.s32.totalorder %s113, %s129
      %p131 = scmp.eq.s32.totalorder %s15, 0
      %p132 = por %p130, %p131
      %p133 = scmp.le.s32.totalorder 1, %s9
      %p134 = scmp.lt.s32.totalorder %s9, 7
      %p135 = pnand %p133, %p134
      %p136 = pneg %p135
      // Predicated region
      $region9: #{criterion_forward.1} parent=5 // pred_check
        _
      $region10: #{criterion_forward.1} parent=5 // pred_check_branch
        %138 = sbr.rel (%p135) target = $region12
      $region11: #{criterion_forward.1} parent=5 // pred_region
        %s139 = ssub.s32 %s9, 1
      $region12: #{criterion_forward.1} parent=5 // pred_fallthru
        _
      %p140 = scmp.lt.s32.totalorder %s9, 6
      // Predicated region
      $region13: #{criterion_forward.1} parent=5 // pred_check
        %p141 = pneg %p140
      $region14: #{criterion_forward.1} parent=5 // pred_check_branch
        %143 = sbr.rel (%p141) target = $region16
      $region15: #{criterion_forward.1} parent=5 // pred_region
        // Predicated region
        $region17: #{criterion_forward.1} parent=15 // pred_check
          %p144 = pneg %p41
        $region18: #{criterion_forward.1} parent=15 // pred_check_branch
          %146 = sbr.rel (%p144) target = $region20
        $region19: #{criterion_forward.1} parent=15 // pred_region
          %p147 = scmp.lt.s32.totalorder %s16, 1
          %s148 = scalar_select %p147, %s16, 1
          %s149 = smul.addr %s148, 4
          %s150 = scalar_lea.vmem %s0, %s149
        $region20: #{criterion_forward.1} parent=15 // pred_fallthru
          _
        // Predicated region
        $region21: #{criterion_forward.1} parent=15 // pred_check
          %p151 = pneg %p67
        $region22: #{criterion_forward.1} parent=15 // pred_check_branch
          %153 = sbr.rel (%p151) target = $region24
        $region23: #{criterion_forward.1} parent=15 // pred_region
          %s154 = sand.u32 %s57, 1
          %s155 = sand.u32 %s57, 1
          %s156 = smul.addr %s155, 16
          %s157 = scalar_lea.vmem [#allocation4], %s156
          %s158 = smul.addr %s17, 4
          %s159 = scalar_lea.vmem %s1, %s158
          // Predicated region
          $region25: #{criterion_forward.1} parent=23 // pred_check
            _
          $region26: #{criterion_forward.1} parent=23 // pred_check_branch
            %161 = sbr.rel (0) target = $region28
          $region27: #{criterion_forward.1} parent=23 // pred_region
            // Predicated region
            $region29: #{criterion_forward.1} parent=27 // pred_check
              _
            $region30: #{criterion_forward.1} parent=27 // pred_check_branch
              %163 = sbr.rel target = $region32
            $region31: #{criterion_forward.1} parent=27 // pred_region
              // Predicated region
              $region44: #{criterion_forward.1} parent=31 // pred_check
                _
              $region45: #{criterion_forward.1} parent=31 // pred_check_branch
                %184 = sbr.rel (0) target = $region47
              $region46: #{criterion_forward.1} parent=31 // pred_region
                loop: start=0, step=1, limit=1
                $region48: #{criterion_forward.1} parent=46 // loop_pre_header
                  _
                $region49: #{criterion_forward.1} parent=46 // loop_header
                  %s186 = sphi 0, %s190
                  %p187 = scmp.ge.s32.totalorder %s186, 1
                  %s191 = sphi %s159, %s159
                  %s192 = sphi %s157, %s157
                $region50: #{criterion_forward.1} parent=46 // loop_header_branch
                  %189 = sbr.rel (%p187) target = $region54
                $region51: #{criterion_forward.1} parent=46 // loop_body
                  _
                $region52: #{criterion_forward.1} parent=46 // loop_footer
                  %s190 = sadd.s32 1, %s186
                $region53: #{criterion_forward.1} parent=46 // loop_footer_branch
                  %185 = sbr.rel target = $region49
                $region54: #{criterion_forward.1} parent=46 // loop_exit
                  _
                loop: start=0, step=1, limit=1
                $region55: #{criterion_forward.1} parent=46 // loop_pre_header
                  _
                $region56: #{criterion_forward.1} parent=46 // loop_header
                  %s195 = sphi 0, %s199
                  %p196 = scmp.ge.s32.totalorder %s195, 1
                  %s200 = sphi %s159, %s159
                  %s201 = sphi %s157, %s157
                $region57: #{criterion_forward.1} parent=46 // loop_header_branch
                  %198 = sbr.rel (%p196) target = $region61
                $region58: #{criterion_forward.1} parent=46 // loop_body
                  %v202 = vld [vmem:[%s200] sm:$0xf]
                  %203 = vst [vmem:[%s201] sm:$0xf] %v202
                  %v204 = vld [vmem:[%s200 + $0xc] sm:$0xf]
                  %205 = vst [vmem:[%s201 + $0x4] sm:$0xf] %v204
                  %v206 = vld [vmem:[%s200 + $0x18] sm:$0xf]
                  %207 = vst [vmem:[%s201 + $0x8] sm:$0xf] %v206
                  %v208 = vld [vmem:[%s200 + $0x24] sm:$0xf]
                  %209 = vst [vmem:[%s201 + $0xc] sm:$0xf] %v208
                $region59: #{criterion_forward.1} parent=46 // loop_footer
                  %s199 = sadd.s32 1, %s195
                $region60: #{criterion_forward.1} parent=46 // loop_footer_branch
                  %194 = sbr.rel target = $region56
                $region61: #{criterion_forward.1} parent=46 // loop_exit
                  _
              $region47: #{criterion_forward.1} parent=31 // pred_fallthru
                _
            $region32: #{criterion_forward.1} parent=27 // pred_fallthru
              _
            // Predicated region
            $region33: #{criterion_forward.1} parent=27 // pred_check
              _
            $region34: #{criterion_forward.1} parent=27 // pred_check_branch
              %165 = sbr.rel (0) target = $region36
            $region35: #{criterion_forward.1} parent=27 // pred_region
              loop: start=0, step=1, limit=1
              $region37: #{criterion_forward.1} parent=35 // loop_pre_header
                _
              $region38: #{criterion_forward.1} parent=35 // loop_header
                %s168 = sphi 0, %s172
                %p169 = scmp.ge.s32.totalorder %s168, 1
                %s173 = sphi %s159, %s159
                %s174 = sphi %s157, %s157
              $region39: #{criterion_forward.1} parent=35 // loop_header_branch
                %171 = sbr.rel (%p169) target = $region43
              $region40: #{criterion_forward.1} parent=35 // loop_body
                %v175 = vld [vmem:[%s173] sm:$0xf]
                %176 = vst [vmem:[%s174] sm:$0xf] %v175
                %v177 = vld [vmem:[%s173 + $0xc] sm:$0xf]
                %178 = vst [vmem:[%s174 + $0x4] sm:$0xf] %v177
                %v179 = vld [vmem:[%s173 + $0x18] sm:$0xf]
                %180 = vst [vmem:[%s174 + $0x8] sm:$0xf] %v179
                %v181 = vld [vmem:[%s173 + $0x24] sm:$0xf]
                %182 = vst [vmem:[%s174 + $0xc] sm:$0xf] %v181
              $region41: #{criterion_forward.1} parent=35 // loop_footer
                %s172 = sadd.s32 1, %s168
              $region42: #{criterion_forward.1} parent=35 // loop_footer_branch
                %167 = sbr.rel target = $region38
              $region43: #{criterion_forward.1} parent=35 // loop_exit
                _
            $region36: #{criterion_forward.1} parent=27 // pred_fallthru
              _
          $region28: #{criterion_forward.1} parent=23 // pred_fallthru
            _
          %210 = vnop
        $region24: #{criterion_forward.1} parent=15 // pred_fallthru
          _
        // Predicated region
        $region62: #{criterion_forward.1} parent=15 // pred_check
          %p211 = pneg %p93
        $region63: #{criterion_forward.1} parent=15 // pred_check_branch
          %213 = sbr.rel (%p211) target = $region65
        $region64: #{criterion_forward.1} parent=15 // pred_region
          %p214 = scmp.lt.s32.totalorder %s17, 2
          %s215 = scalar_select %p214, %s17, 2
          %s216 = scalar_lea.vmem %s2, %s215
        $region65: #{criterion_forward.1} parent=15 // pred_fallthru
          _
      $region16: #{criterion_forward.1} parent=5 // pred_fallthru
        _
      %p217 = scmp.le.s32.totalorder 1, %s9
      %p218 = scmp.lt.s32.totalorder %s9, 7
      %p219 = pnand %p217, %p218
      %p220 = pneg %p219
      // Predicated region
      $region66: #{criterion_forward.1} parent=5 // pred_check
        _
      $region67: #{criterion_forward.1} parent=5 // pred_check_branch
        %222 = sbr.rel (%p219) target = $region69
      $region68: #{criterion_forward.1} parent=5 // pred_region
        %s223 = ssub.s32 %s9, 1
        %s224 = sand.u32 %s60, 1
        %s225 = sand.u32 %s60, 1
        %s226 = smul.addr %s225, 16
        %s227 = scalar_lea.vmem [#allocation4], %s226
        // Predicated region
        $region70: #{criterion_forward.1} parent=68 // pred_check
          %p228 = pneg %p73
        $region71: #{criterion_forward.1} parent=68 // pred_check_branch
          %230 = sbr.rel (%p228) target = $region73
        $region72: #{criterion_forward.1} parent=68 // pred_region
          _
        $region73: #{criterion_forward.1} parent=68 // pred_fallthru
          _
        %p231 = scmp.lt.s32.totalorder %s18, 1
        %s232 = scalar_select %p231, %s18, 1
        %s233 = smul.addr %s232, 4
        %s234 = scalar_lea.vmem %s0, %s233
        %p235 = pneg %p47
        %p236 = pneg %p44
        %s237 = sand.u32 %s60, 1
        %s238 = sand.u32 %s60, 1
        %s239 = smul.addr %s238, 16
        %s240 = scalar_lea.vmem [#allocation4], %s239
        %p241 = pneg %p73
        %p242 = pneg %p70
        %p243 = scmp.lt.s32.totalorder %s19, 2
        %s244 = scalar_select %p243, %s19, 2
        %s245 = scalar_lea.vmem %s2, %s244
        %p246 = pneg %p99
        %p247 = pneg %p96
        %p248 = pneg %p125
        %p249 = pneg %p122
        %p250 = scmp.lt.s32.totalorder %s18, 1
        %s251 = scalar_select %p250, %s18, 1
        %s252 = smul.addr %s251, 8
        %s253 = scalar_lea.vmem %s3, %s252
        %p254 = scmp.lt.s32.totalorder %s18, 1
        %s255 = scalar_select %p254, %s18, 1
        %s256 = smul.addr %s255, 4
        %s257 = scalar_lea.vmem %s0, %s256
        %p258 = scmp.lt.s32.totalorder %s19, 2
        %s259 = scalar_select %p258, %s19, 2
        %s260 = scalar_lea.vmem %s2, %s259
        %p261 = scmp.lt.s32.totalorder %s18, 1
        %s262 = scalar_select %p261, %s18, 1
        %s263 = smul.addr %s262, 8
        %s264 = scalar_lea.vmem %s3, %s263
        %p266 = scmp.eq.s32.totalorder %s19, 0
        // Predicated region
        $region74: #{criterion_forward.1} parent=68 // pred_check
          %p267 = pneg %p266
        $region75: #{criterion_forward.1} parent=68 // pred_check_branch
          %269 = sbr.rel (%p267) target = $region77
        $region76: #{criterion_forward.1} parent=68 // pred_region
          %vm270 = vcmask 7168
          %271 = vst.msk [vmem:[#allocation2] sm:$0xff] %vm270, -1e+30
          %272 = vst.msk [vmem:[#allocation3] sm:$0xff] %vm270, 0.0
        $region77: #{criterion_forward.1} parent=68 // pred_fallthru
          _
        %v273 = vld [vmem:[%s257] sm:$0xf]
        %v274 = vld [vmem:[%s227] sm:$0xf]
        %v275 = vld [vmem:[%s227 + $0x4] sm:$0xf]
        %v276 = vld [vmem:[%s227 + $0x8] sm:$0xf]
        %v277 = vld [vmem:[%s227 + $0xc] sm:$0xf]
        %v278 = vld [vmem:[%s260] sm:$0x1]
        %v280 = vlaneseq
        %v281 = vshrl.u32 %v280, 7
        %v282 = vsub.s32 0, %v281
        %v283 = vrot.slane %v278, %v282
        %v289 = vunpack.c.l.b16 %v274
        %v290 = vunpack.c.l.b16 %v275
        %v291 = vunpack.c.l.b16 %v276
        %v292 = vunpack.c.l.b16 %v277
        %v293 = vpack.c.b16 %v290, %v289
        %v294 = vpack.c.b16 %v292, %v291
        %vm297 = vcmask 261120
        %v299 = vsel %vm297, %v273, 0
        %301 = vmatprep.subr.bf16.mxu0 0
        %302 = vmatpush1.bf16.msra.mxu0 %v293
        %303 = vmatprep.subr.bf16.mxu0 0
        %304 = vmatpush1.bf16.msra.mxu0 %v294
        %305 = vmatprep.subr.bf16.mxu0 0
        %306 = vmatpush1.bf16.msra.mxu0 0
        %307 = vmatprep.subr.bf16.mxu0 0
        %308 = vmatpush1.bf16.msra.mxu0 0
        %309 = vmatprep.subr.bf16.mxu0 0
        %310 = vmatpush1.bf16.msra.mxu0 0
        %311 = vmatprep.subr.bf16.mxu0 0
        %312 = vmatpush1.bf16.msra.mxu0 0
        %313 = vmatprep.subr.bf16.mxu0 0
        %314 = vmatpush1.bf16.msra.mxu0 0
        %315 = vmatprep.subr.bf16.mxu0 0
        %316 = vmatpush1.bf16.msra.mxu0 0
        %317 = vmatprep.subr.bf16.mxu0 0
        %318 = vmatpush1.bf16.msra.mxu0 0
        %319 = vmatprep.subr.bf16.mxu0 0
        %320 = vmatpush1.bf16.msra.mxu0 0
        %321 = vmatprep.subr.bf16.mxu0 0
        %322 = vmatpush1.bf16.msra.mxu0 0
        %323 = vmatprep.subr.bf16.mxu0 0
        %324 = vmatpush1.bf16.msra.mxu0 0
        %325 = vmatprep.subr.bf16.mxu0 0
        %326 = vmatpush1.bf16.msra.mxu0 0
        %327 = vmatprep.subr.bf16.mxu0 0
        %328 = vmatpush1.bf16.msra.mxu0 0
        %329 = vmatprep.subr.bf16.mxu0 0
        %330 = vmatpush1.bf16.msra.mxu0 0
        %331 = vmatprep.subr.bf16.mxu0 0
        %332 = vmatpush1.bf16.msra.mxu0 0
        %333 = vmatprep.mubr.bf16.mxu0 0
        %334 = vmatmul.mubr.bf16.gmra.mrb[0].mxu0 %v299
        %v335 = vpop.f32.mrb[0].mxu0
        %v336 = vadd.f32 %v283, %v335
        %v337 = vpop.f32.mrb[0].mxu0
        %v338 = vpop.f32.mrb[0].mxu0
        %v339 = vpop.f32.mrb[0].mxu0
        %340 = vdwg.mxu0
        %v341 = vlaneseq
        %v342 = vand.u32 %v341, 127
        %s343 = smul.u32 %s19, 128
        %s344 = ssub.s32 320, %s343
        %v345 = vstv %s344
        %vm346 = vcmp.lt.s32.totalorder %v342, %v345
        %v347 = vsel %vm346, %v336, -1e+30
        %v348 = vld [vmem:[#allocation2] sm:$0xff]
        %349 = vmax.xlane.f32.xlu0 %v347
        %v350 = vpop.xlane.xlu0 %349
        %v351 = vmax.f32 %v348, %v350
        %v352 = vld [vmem:[#allocation3] sm:$0xff]
        %v353 = vsub.f32 %v348, %v351
        %v354 = vmul.f32 %v353, 1.442695
        %v355 = vpow.pop %v354
        %v356 = vmul.f32 %v352, %v355
        %358 = vset.pattern.permute.xlu0 0
        %359 = vperm.xlu0 %358, %v351
        %v360 = vpop.permute.xlu0 %359
        %v362 = vsub.f32 %v347, %v360
        %v363 = vmul.f32 %v362, 1.442695
        %v364 = vpow.pop %v363
        %365 = vadd.xlane.f32.xlu0 %v364
        %v366 = vpop.xlane.xlu0 %365
        %v367 = vadd.f32 %v356, %v366
        %vm368 = vcmask 7168
        %369 = vst.msk [vmem:[#allocation3] sm:$0xff] %vm368, %v367
        %370 = vst.msk [vmem:[#allocation2] sm:$0xff] %vm368, %v351
        %p371 = scmp.eq.s32.totalorder %s19, 2
        // Predicated region
        $region78: #{criterion_forward.1} parent=68 // pred_check
          %p372 = pneg %p371
        $region79: #{criterion_forward.1} parent=68 // pred_check_branch
          %374 = sbr.rel (%p372) target = $region81
        $region80: #{criterion_forward.1} parent=68 // pred_region
          %v375 = vld [vmem:[#allocation2] sm:$0xff]
          %v376 = vld [vmem:[#allocation3] sm:$0xff]
          %v377 = vlog2.pop %v376
          %v378 = vmul.f32 %v377, 0.6931472
          %v379 = vadd.f32 %v375, %v378
          %380 = vst.msk [vmem:[%s264] sm:$0xff] %vm368, %v379
        $region81: #{criterion_forward.1} parent=68 // pred_fallthru
          _
        %p381 = scmp.lt.s32.totalorder %s18, 1
        %s382 = scalar_select %p381, %s18, 1
        %s383 = smul.addr %s382, 8
        %s384 = scalar_lea.vmem %s3, %s383
        // Predicated region
        $region82: #{criterion_forward.1} parent=68 // pred_check
          %p385 = pneg %p122
        $region83: #{criterion_forward.1} parent=68 // pred_check_branch
          %387 = sbr.rel (%p385) target = $region85
        $region84: #{criterion_forward.1} parent=68 // pred_region
          _
        $region85: #{criterion_forward.1} parent=68 // pred_fallthru
          _
      $region69: #{criterion_forward.1} parent=5 // pred_fallthru
        _
      %p388 = scmp.le.s32.totalorder 2, %s9
      // Predicated region
      $region86: #{criterion_forward.1} parent=5 // pred_check
        %p389 = pneg %p388
      $region87: #{criterion_forward.1} parent=5 // pred_check_branch
        %391 = sbr.rel (%p389) target = $region89
      $region88: #{criterion_forward.1} parent=5 // pred_region
        %s392 = ssub.s32 %s9, 2
        // Predicated region
        $region90: #{criterion_forward.1} parent=88 // pred_check
          %p393 = pneg %p128
        $region91: #{criterion_forward.1} parent=88 // pred_check_branch
          %395 = sbr.rel (%p393) target = $region93
        $region92: #{criterion_forward.1} parent=88 // pred_region
          %p396 = scmp.lt.s32.totalorder %s20, 1
          %s397 = scalar_select %p396, %s20, 1
          %s398 = smul.addr %s397, 8
          %s399 = scalar_lea.vmem %s3, %s398
        $region93: #{criterion_forward.1} parent=88 // pred_fallthru
          _
      $region89: #{criterion_forward.1} parent=5 // pred_fallthru
        _
    $region6: #{criterion_forward.1} parent=1 // loop_footer
      %s13 = sadd.s32 1, %s9
    $region7: #{criterion_forward.1} parent=1 // loop_footer_branch
      %8 = sbr.rel target = $region3
    $region8: #{criterion_forward.1} parent=1 // loop_exit
      _

</llo_original>
